<compile_context>
chip_gen: v7x
topology: tpu7x:2x2x1
jax: 0.10.0
libtpu: 0.0.40
codegen_flags: <defaults>
</compile_context>

<pallas_src>
import jax
import jax.numpy as jnp
from jax.experimental import pallas as pl
from jax.experimental.pallas import tpu as pltpu


def _round_up(x, m):
    return (x + m - 1) // m * m


def _simclr_kernel(x_ref, wenc_ref, benc_ref, w1_ref, b1_ref, w2_ref, b2_ref,
                   z_ref, p_ref, acc_ref):
    """Grid = (row_tile i, K tile k).  Encoder matmul is K-accumulated into an
    f32 VMEM scratch; projection head runs once per row tile at the last k."""
    k = pl.program_id(1)

    @pl.when(k == 0)
    def _():
        acc_ref[...] = jnp.zeros_like(acc_ref)

    # encoder partial product: (TM, TK) @ (TK, E_pad), f32 accumulation
    acc_ref[...] += jnp.dot(x_ref[...], wenc_ref[...],
                            preferred_element_type=jnp.float32)

    @pl.when(k == pl.num_programs(1) - 1)
    def _():
        z = acc_ref[...] + benc_ref[...]                   # f32
        z_ref[...] = z.astype(z_ref.dtype)

        # projection head: Linear -> ReLU -> Linear (bf16 MXU inputs,
        # f32 accumulation, f32 bias adds)
        h = jnp.dot(z.astype(w1_ref.dtype), w1_ref[...],
                    preferred_element_type=jnp.float32) + b1_ref[...]
        h = jnp.maximum(h, 0.0)
        p = jnp.dot(h.astype(w2_ref.dtype), w2_ref[...],
                    preferred_element_type=jnp.float32) + b2_ref[...]
        p_ref[...] = p.astype(p_ref.dtype)


def simclr_forward(x1, x2, params, *, compute_dtype=jnp.bfloat16,
                   tm_max=256, tk_max=512):
    """SimCLR.forward: returns (z1, z2, p1, p2).  x1, x2: NCHW, same shape."""
    wenc, benc, w1, b1, w2, b2 = params
    B = x1.shape[0]
    d_in, E = wenc.shape
    Hd = w1.shape[1]
    P = w2.shape[1]
    f32 = jnp.float32
    cd = compute_dtype

    # ---- both views in ONE call: weights stay VMEM-resident ----
    x = jnp.concatenate([x1.reshape(B, -1), x2.reshape(B, -1)], axis=0)
    rows = 2 * B

    # ---- MXU / vreg friendly tiles & padded feature dims ----
    tm = tm_max if rows >= tm_max else _round_up(rows, 16)
    rows_pad = _round_up(rows, tm)
    d_pad = _round_up(d_in, 128)
    tk = min(tk_max, d_pad)
    d_pad = _round_up(d_pad, tk)
    E_pad = _round_up(E, 128)        # lane-dense z stores, full MXU N/K dims
    P_pad = _round_up(P, 128)

    # ---- zero padding contributes exactly 0 to every matmul ----
    xp = jnp.zeros((rows_pad, d_pad), cd).at[:rows, :d_in].set(x.astype(cd))
    wenc_p = jnp.zeros((d_pad, E_pad), cd).at[:d_in, :E].set(wenc.astype(cd))
    benc_p = jnp.zeros((1, E_pad), f32).at[:, :E].set(benc.astype(f32))
    w1_p = jnp.zeros((E_pad, Hd), cd).at[:E, :].set(w1.astype(cd))
    b1_p = b1.astype(f32).reshape(1, Hd)
    w2_p = jnp.zeros((Hd, P_pad), cd).at[:, :P].set(w2.astype(cd))
    b2_p = jnp.zeros((1, P_pad), f32).at[:, :P].set(b2.astype(f32))

    grid = (rows_pad // tm, d_pad // tk)

    itemsize = jnp.dtype(cd).itemsize
    flops = 2 * rows_pad * (d_pad * E_pad + E_pad * Hd + Hd * P_pad)
    bytes_accessed = (xp.size * itemsize + wenc_p.size * itemsize
                      + w1_p.size * itemsize + w2_p.size * itemsize
                      + rows_pad * (E_pad + P_pad) * 4)

    z_pad, p_pad = pl.pallas_call(
        _simclr_kernel,
        out_shape=(
            jax.ShapeDtypeStruct((rows_pad, E_pad), f32),
            jax.ShapeDtypeStruct((rows_pad, P_pad), f32),
        ),
        grid_spec=pltpu.PrefetchScalarGridSpec(
            num_scalar_prefetch=0,
            grid=grid,
            in_specs=[
                pl.BlockSpec((tm, tk), lambda i, k: (i, k)),       # x
                pl.BlockSpec((tk, E_pad), lambda i, k: (k, 0)),    # wenc (K-tiled)
                pl.BlockSpec((1, E_pad), lambda i, k: (0, 0)),     # benc
                pl.BlockSpec((E_pad, Hd), lambda i, k: (0, 0)),    # w1 (resident)
                pl.BlockSpec((1, Hd), lambda i, k: (0, 0)),        # b1
                pl.BlockSpec((Hd, P_pad), lambda i, k: (0, 0)),    # w2 (resident)
                pl.BlockSpec((1, P_pad), lambda i, k: (0, 0)),     # b2
            ],
            out_specs=(
                pl.BlockSpec((tm, E_pad), lambda i, k: (i, 0)),    # z
                pl.BlockSpec((tm, P_pad), lambda i, k: (i, 0)),    # p
            ),
            scratch_shapes=[pltpu.VMEM((tm, E_pad), jnp.float32)],  # z accumulator
        ),
        compiler_params=pltpu.CompilerParams(
            dimension_semantics=("parallel", "arbitrary"),
            vmem_limit_bytes=32 * 1024 * 1024,   # safe on v5e/v6e/v7x; usage ~2 MiB
        ),
        cost_estimate=pl.CostEstimate(flops=flops, transcendentals=0,
                                      bytes_accessed=bytes_accessed),
    )(xp, wenc_p, benc_p, w1_p, b1_p, w2_p, b2_p)

    z = z_pad[:rows, :E]
    p = p_pad[:rows, :P]
    return z[:B], z[B:], p[:B], p[B:]


def init_params(key, d_in, embed_dim, hidden=512, projection_dim=128):
    """Mimics PyTorch Linear default init (uniform +-1/sqrt(fan_in))."""
    ks = jax.random.split(key, 6)

    def lin(kw, kb, fan_in, fan_out):
        lim = 1.0 / jnp.sqrt(jnp.float32(fan_in))
        w = jax.random.uniform(kw, (fan_in, fan_out), jnp.float32, -lim, lim)
        b = jax.random.uniform(kb, (1, fan_out), jnp.float32, -lim, lim)
        return w, b

    wenc, benc = lin(ks[0], ks[1], d_in, embed_dim)
    w1, b1 = lin(ks[2], ks[3], embed_dim, hidden)
    w2, b2 = lin(ks[4], ks[5], hidden, projection_dim)
    return (wenc, benc, w1, b1, w2, b2)


if __name__ == "__main__":
    key = jax.random.PRNGKey(0)
    k_x1, k_x2, k_params = jax.random.split(key, 3)

    # small shapes consistent with an image encoder input
    B, C, Himg, Wimg = 2, 4, 16, 16
    embed_dim = 32
    projection_dim = 128

    x1 = jax.random.normal(k_x1, (B, C, Himg, Wimg), jnp.float32)
    x2 = jax.random.normal(k_x2, (B, C, Himg, Wimg), jnp.float32)

    params = init_params(k_params, C * Himg * Wimg, embed_dim,
                         hidden=512, projection_dim=projection_dim)

    z1, z2, p1, p2 = jax.jit(simclr_forward)(x1, x2, params)
    jax.block_until_ready((z1, z2, p1, p2))

    # pure-JAX reference mirroring the kernel's bf16 MXU inputs / f32 accum.
    wenc, benc, w1, b1, w2, b2 = params
    bf = lambda a: a.astype(jnp.bfloat16).astype(jnp.float32)

    def ref(x):
        z = bf(x.reshape(B, -1)) @ bf(wenc) + benc
        h = jnp.maximum(bf(z) @ bf(w1) + b1, 0.0)
        return z, bf(h) @ bf(w2) + b2

    rz1, rp1 = ref(x1)
    rz2, rp2 = ref(x2)
    assert z1.shape == (B, embed_dim) and p1.shape == (B, projection_dim)
    assert z2.shape == (B, embed_dim) and p2.shape == (B, projection_dim)
    assert jnp.allclose(z1, rz1, atol=1e-2, rtol=1e-2)
    assert jnp.allclose(z2, rz2, atol=1e-2, rtol=1e-2)
    assert jnp.allclose(p1, rp1, atol=1e-2, rtol=1e-2)
    assert jnp.allclose(p2, rp2, atol=1e-2, rtol=1e-2)

    print("KERNEL_OK")
</pallas_src>

<mosaic_0001>
module attributes {stable_mosaic.version = 11 : i64} {
  func.func @_simclr_kernel(%arg0: i32, %arg1: i32, %arg2: memref<16x512xbf16, #tpu.memory_space<vmem>>, %arg3: memref<512x128xbf16, #tpu.memory_space<vmem>>, %arg4: memref<1x128xf32, #tpu.memory_space<vmem>>, %arg5: memref<128x512xbf16, #tpu.memory_space<vmem>>, %arg6: memref<1x512xf32, #tpu.memory_space<vmem>>, %arg7: memref<512x128xbf16, #tpu.memory_space<vmem>>, %arg8: memref<1x128xf32, #tpu.memory_space<vmem>>, %arg9: memref<16x128xf32, #tpu.memory_space<vmem>>, %arg10: memref<16x128xf32, #tpu.memory_space<vmem>>, %arg11: memref<16x128xf32, #tpu.memory_space<vmem>>) attributes {dimension_semantics = [#tpu.dimension_semantics<parallel>, #tpu.dimension_semantics<arbitrary>], iteration_bounds = array<i64: 1, 2>, scalar_prefetch = 0 : i64, scratch_operands = 1 : i64, tpu.core_type = #tpu.core_type<tc>, window_params = [{transform_indices = @transform_0, window_bounds = array<i64: 16, 512>}, {transform_indices = @transform_1, window_bounds = array<i64: 512, 128>}, {pipeline_mode = #tpu.pipeline_mode<synchronous>, transform_indices = @transform_2, window_bounds = array<i64: 1, 128>}, {pipeline_mode = #tpu.pipeline_mode<synchronous>, transform_indices = @transform_3, window_bounds = array<i64: 128, 512>}, {pipeline_mode = #tpu.pipeline_mode<synchronous>, transform_indices = @transform_4, window_bounds = array<i64: 1, 512>}, {pipeline_mode = #tpu.pipeline_mode<synchronous>, transform_indices = @transform_5, window_bounds = array<i64: 512, 128>}, {pipeline_mode = #tpu.pipeline_mode<synchronous>, transform_indices = @transform_6, window_bounds = array<i64: 1, 128>}, {transform_indices = @transform_7, window_bounds = array<i64: 16, 128>}, {transform_indices = @transform_8, window_bounds = array<i64: 16, 128>}]} {
    %c0_i32 = arith.constant 0 : i32
    %0 = arith.cmpi eq, %arg1, %c0_i32 : i32
    %1 = arith.extui %0 : i1 to i32
    %c0_i32_0 = arith.constant 0 : i32
    %2 = arith.cmpi ne, %1, %c0_i32_0 : i32
    scf.if %2 {
      %cst_9 = arith.constant 0.000000e+00 : f32
      %12 = vector.broadcast %cst_9 : f32 to vector<16x128xf32>
      %c0_10 = arith.constant 0 : index
      %c0_11 = arith.constant 0 : index
      %13 = vector.load %arg11[%c0_10, %c0_11] : memref<16x128xf32, #tpu.memory_space<vmem>>, vector<16x128xf32>
      tpu.vector_store %arg11[%c0_10, %c0_11], %12 {strides = array<i32>} : memref<16x128xf32, #tpu.memory_space<vmem>>, vector<16x128xf32>,
    } else {
    }
    %c0 = arith.constant 0 : index
    %c0_1 = arith.constant 0 : index
    %3 = vector.load %arg11[%c0, %c0_1] : memref<16x128xf32, #tpu.memory_space<vmem>>, vector<16x128xf32>
    %c0_2 = arith.constant 0 : index
    %c0_3 = arith.constant 0 : index
    %4 = vector.load %arg2[%c0_2, %c0_3] : memref<16x512xbf16, #tpu.memory_space<vmem>>, vector<16x512xbf16>
    %c0_4 = arith.constant 0 : index
    %c0_5 = arith.constant 0 : index
    %5 = vector.load %arg3[%c0_4, %c0_5] : memref<512x128xbf16, #tpu.memory_space<vmem>>, vector<512x128xbf16>
    %cst = arith.constant dense<0.000000e+00> : vector<16x128xf32>
    %6 = tpu.matmul %4, %5, %cst {dimension_numbers = #tpu.dot_dimension_numbers<[1], [0], [0], [1], [0, 0, 1, 1], [], []>} : vector<16x512xbf16>, vector<512x128xbf16>, vector<16x128xf32> -> vector<16x128xf32>
    %7 = arith.addf %3, %6 : vector<16x128xf32>
    %c0_6 = arith.constant 0 : index
    %c0_7 = arith.constant 0 : index
    %8 = vector.load %arg11[%c0_6, %c0_7] : memref<16x128xf32, #tpu.memory_space<vmem>>, vector<16x128xf32>
    tpu.vector_store %arg11[%c0_6, %c0_7], %7 {strides = array<i32>} : memref<16x128xf32, #tpu.memory_space<vmem>>, vector<16x128xf32>,
    %c1_i32 = arith.constant 1 : i32
    %9 = arith.cmpi eq, %arg1, %c1_i32 : i32
    %10 = arith.extui %9 : i1 to i32
    %c0_i32_8 = arith.constant 0 : i32
    %11 = arith.cmpi ne, %10, %c0_i32_8 : i32
    scf.if %11 {
      %c0_9 = arith.constant 0 : index
      %c0_10 = arith.constant 0 : index
      %12 = vector.load %arg11[%c0_9, %c0_10] : memref<16x128xf32, #tpu.memory_space<vmem>>, vector<16x128xf32>
      %c0_11 = arith.constant 0 : index
      %c0_12 = arith.constant 0 : index
      %13 = vector.load %arg4[%c0_11, %c0_12] : memref<1x128xf32, #tpu.memory_space<vmem>>, vector<1x128xf32>
      %14 = vector.broadcast %13 : vector<1x128xf32> to vector<16x128xf32>
      %15 = arith.addf %12, %14 : vector<16x128xf32>
      %c0_13 = arith.constant 0 : index
      %c0_14 = arith.constant 0 : index
      %16 = vector.load %arg9[%c0_13, %c0_14] : memref<16x128xf32, #tpu.memory_space<vmem>>, vector<16x128xf32>
      tpu.vector_store %arg9[%c0_13, %c0_14], %15 {strides = array<i32>} : memref<16x128xf32, #tpu.memory_space<vmem>>, vector<16x128xf32>,
      %17 = arith.truncf %15 : vector<16x128xf32> to vector<16x128xbf16>
      %c0_15 = arith.constant 0 : index
      %c0_16 = arith.constant 0 : index
      %18 = vector.load %arg5[%c0_15, %c0_16] : memref<128x512xbf16, #tpu.memory_space<vmem>>, vector<128x512xbf16>
      %cst_17 = arith.constant dense<0.000000e+00> : vector<16x512xf32>
      %19 = tpu.matmul %17, %18, %cst_17 {dimension_numbers = #tpu.dot_dimension_numbers<[1], [0], [0], [1], [0, 0, 1, 1], [], []>} : vector<16x128xbf16>, vector<128x512xbf16>, vector<16x512xf32> -> vector<16x512xf32>
      %c0_18 = arith.constant 0 : index
      %c0_19 = arith.constant 0 : index
      %20 = vector.load %arg6[%c0_18, %c0_19] : memref<1x512xf32, #tpu.memory_space<vmem>>, vector<1x512xf32>
      %21 = vector.broadcast %20 : vector<1x512xf32> to vector<16x512xf32>
      %22 = arith.addf %19, %21 : vector<16x512xf32>
      %cst_20 = arith.constant 0.000000e+00 : f32
      %23 = vector.broadcast %cst_20 : f32 to vector<16x512xf32>
      %24 = arith.maximumf %22, %23 : vector<16x512xf32>
      %25 = arith.truncf %24 : vector<16x512xf32> to vector<16x512xbf16>
      %c0_21 = arith.constant 0 : index
      %c0_22 = arith.constant 0 : index
      %26 = vector.load %arg7[%c0_21, %c0_22] : memref<512x128xbf16, #tpu.memory_space<vmem>>, vector<512x128xbf16>
      %cst_23 = arith.constant dense<0.000000e+00> : vector<16x128xf32>
      %27 = tpu.matmul %25, %26, %cst_23 {dimension_numbers = #tpu.dot_dimension_numbers<[1], [0], [0], [1], [0, 0, 1, 1], [], []>} : vector<16x512xbf16>, vector<512x128xbf16>, vector<16x128xf32> -> vector<16x128xf32>
      %c0_24 = arith.constant 0 : index
      %c0_25 = arith.constant 0 : index
      %28 = vector.load %arg8[%c0_24, %c0_25] : memref<1x128xf32, #tpu.memory_space<vmem>>, vector<1x128xf32>
      %29 = vector.broadcast %28 : vector<1x128xf32> to vector<16x128xf32>
      %30 = arith.addf %27, %29 : vector<16x128xf32>
      %c0_26 = arith.constant 0 : index
      %c0_27 = arith.constant 0 : index
      %31 = vector.load %arg10[%c0_26, %c0_27] : memref<16x128xf32, #tpu.memory_space<vmem>>, vector<16x128xf32>
      tpu.vector_store %arg10[%c0_26, %c0_27], %30 {strides = array<i32>} : memref<16x128xf32, #tpu.memory_space<vmem>>, vector<16x128xf32>,
    } else {
    }
    return
  }
  func.func @transform_0(%arg0: i32, %arg1: i32) -> (i32, i32) {
    %c0_i32 = arith.constant 0 : i32
    return %arg0, %arg1 : i32, i32
  }
  func.func @transform_1(%arg0: i32, %arg1: i32) -> (i32, i32) {
    %c0_i32 = arith.constant 0 : i32
    %c0_i32_0 = arith.constant 0 : i32
    return %arg1, %c0_i32 : i32, i32
  }
  func.func @transform_2(%arg0: i32, %arg1: i32) -> (i32, i32) {
    %c0_i32 = arith.constant 0 : i32
    %c0_i32_0 = arith.constant 0 : i32
    %c0_i32_1 = arith.constant 0 : i32
    return %c0_i32, %c0_i32_0 : i32, i32
  }
  func.func @transform_3(%arg0: i32, %arg1: i32) -> (i32, i32) {
    %c0_i32 = arith.constant 0 : i32
    %c0_i32_0 = arith.constant 0 : i32
    %c0_i32_1 = arith.constant 0 : i32
    return %c0_i32, %c0_i32_0 : i32, i32
  }
  func.func @transform_4(%arg0: i32, %arg1: i32) -> (i32, i32) {
    %c0_i32 = arith.constant 0 : i32
    %c0_i32_0 = arith.constant 0 : i32
    %c0_i32_1 = arith.constant 0 : i32
    return %c0_i32, %c0_i32_0 : i32, i32
  }
  func.func @transform_5(%arg0: i32, %arg1: i32) -> (i32, i32) {
    %c0_i32 = arith.constant 0 : i32
    %c0_i32_0 = arith.constant 0 : i32
    %c0_i32_1 = arith.constant 0 : i32
    return %c0_i32, %c0_i32_0 : i32, i32
  }
  func.func @transform_6(%arg0: i32, %arg1: i32) -> (i32, i32) {
    %c0_i32 = arith.constant 0 : i32
    %c0_i32_0 = arith.constant 0 : i32
    %c0_i32_1 = arith.constant 0 : i32
    return %c0_i32, %c0_i32_0 : i32, i32
  }
  func.func @transform_7(%arg0: i32, %arg1: i32) -> (i32, i32) {
    %c0_i32 = arith.constant 0 : i32
    %c0_i32_0 = arith.constant 0 : i32
    return %arg0, %c0_i32 : i32, i32
  }
  func.func @transform_8(%arg0: i32, %arg1: i32) -> (i32, i32) {
    %c0_i32 = arith.constant 0 : i32
    %c0_i32_0 = arith.constant 0 : i32
    return %arg0, %c0_i32 : i32, i32
  }
}

</mosaic_0001>

<llo_original>
// kernel: simclr_forward.1
$region0: #{simclr_forward.1}
  #allocation0 [shape = 'u32[]', space=smem, size = 0x4, offset = 0x4, fixed_abs, tag = 'smem constant byte address 0x4 - core index']
  #allocation1 [shape = 'u32[144,128]{1,0:T(1,128)}', space=vmem, size = 0x12000, scoped, tag = 'internal scratch']
  #allocation2 [shape = 'f32[16,128]{1,0:T(8,128)}', space=vmem, size = 0x2000, scoped, tag = 'scratch operand']
  %s0 = inlined_call_operand.vmem [shape: bf16[16,1024], index: 0, kind: input, shape index: {}]
  %s1 = inlined_call_operand.vmem [shape: bf16[1024,128], index: 1, kind: input, shape index: {}]
  %s2 = inlined_call_operand.vmem [shape: f32[1,128], index: 2, kind: input, shape index: {}]
  %s3 = inlined_call_operand.vmem [shape: bf16[128,512], index: 3, kind: input, shape index: {}]
  %s4 = inlined_call_operand.vmem [shape: f32[1,512], index: 4, kind: input, shape index: {}]
  %s5 = inlined_call_operand.vmem [shape: bf16[512,128], index: 5, kind: input, shape index: {}]
  %s6 = inlined_call_operand.vmem [shape: f32[1,128], index: 6, kind: input, shape index: {}]
  %s7 = inlined_call_operand.vmem [shape: f32[16,128], index: 7, kind: output, shape index: {0}]
  %s8 = inlined_call_operand.vmem [shape: f32[16,128], index: 8, kind: output, shape index: {1}]
  %9 = xla_tuple %s7, %s8
  %s10 = sld [smem:[#allocation0]]
  $region100: #{simclr_forward.1} parent=0
    _
  %s12 = ssub.s32 1, %s10
  %s13 = scalar_select 0, %s12, %s10
  $region1: #{simclr_forward.1} parent=0
    #allocation3 [shape = 'u8[32768]{0}', space=vmem, size = 0x8000, scoped, tag = 'input window, operand 0']
    loop: start=0, step=1, limit=4
    $region2: #{simclr_forward.1} parent=1 // loop_pre_header
      _
    $region3: #{simclr_forward.1} parent=1 // loop_header
      %s15 = sphi 0, %s19
      %p16 = scmp.ge.s32.totalorder %s15, 4
      %s22 = sphi 0, %s34
      %s23 = sphi 0, %s30
      %s24 = sphi 0, %s22
      %s25 = sphi 0, %s23
      %s26 = sphi 0, %s24
      %s27 = sphi 0, %s25
      %s39 = sphi 0, %s41
      %s42 = sphi 0, %s39
      %s43 = sphi 0, %s42
      %s59 = sphi 0, %s43
      %s65 = sphi 0, %s67
      %s68 = sphi 0, %s65
      %s69 = sphi 0, %s68
      %s85 = sphi 0, %s69
      %s89 = sphi 0, %s89
      %s91 = sphi 0, %s89
      %s92 = sphi 0, %s91
      %s106 = sphi 0, %s92
      %s110 = sphi 0, %s110
      %s112 = sphi 0, %s110
      %s113 = sphi 0, %s112
      %s127 = sphi 0, %s113
      %s131 = sphi 0, %s131
      %s133 = sphi 0, %s131
      %s134 = sphi 0, %s133
      %s148 = sphi 0, %s134
      %s152 = sphi 0, %s152
      %s154 = sphi 0, %s152
      %s155 = sphi 0, %s154
      %s169 = sphi 0, %s155
      %s173 = sphi 0, %s173
      %s175 = sphi 0, %s173
      %s176 = sphi 0, %s175
      %s190 = sphi 0, %s176
      %s196 = sphi 0, %s198
      %s199 = sphi 0, %s196
      %s200 = sphi 0, %s199
      %s216 = sphi 0, %s200
      %s222 = sphi 0, %s224
      %s225 = sphi 0, %s222
      %s226 = sphi 0, %s225
      %s242 = sphi 0, %s226
    $region4: #{simclr_forward.1} parent=1 // loop_header_branch
      %18 = sbr.rel (%p16) target = $region8
    $region5: #{simclr_forward.1} parent=1 // loop_body
      %s20 = ssub.s32 %s15, 1
      %s21 = ssub.s32 %s15, 2
      %s28 = sadd.s32 1, %s23
      %p29 = scmp.ge.s32.totalorder %s28, 2
      %s30 = scalar_select %p29, 0, %s28
      %s31 = sadd.s32 1, %s22
      %s32 = scalar_select %p29, %s31, %s22
      %p33 = scmp.ge.s32.totalorder %s32, 1
      %s34 = scalar_select %p33, 0, %s32
      %s35 = ssub.s32 %s22, %s34
      %s36 = ssub.s32 %s23, %s30
      %s37 = sor.u32 %s35, %s36
      %p38 = scmp.eq.s32.totalorder %s37, 0
      %s40 = sadd.s32 %s39, 1
      %s41 = scalar_select %p38, %s39, %s40
      %p44 = pneg %p38
      %p45 = scmp.eq.s32.totalorder %s15, 1
      %p46 = por %p44, %p45
      %p47 = scmp.ne.s32.totalorder %s39, %s42
      %p48 = scmp.eq.s32.totalorder %s15, 0
      %p49 = por %p47, %p48
      %p50 = scmp.ne.s32.totalorder %s39, %s42
      %p51 = scmp.eq.s32.totalorder %s20, 1
      %p52 = por %p50, %p51
      %p53 = scmp.ne.s32.totalorder %s42, %s43
      %p54 = scmp.eq.s32.totalorder %s20, 0
      %p55 = por %p53, %p54
      %p56 = scmp.ne.s32.totalorder %s42, %s43
      %p57 = scmp.eq.s32.totalorder %s21, 1
      %p58 = por %p56, %p57
      %p60 = scmp.ne.s32.totalorder %s43, %s59
      %p61 = scmp.eq.s32.totalorder %s21, 0
      %p62 = por %p60, %p61
      %s63 = ssub.s32 %s23, %s30
      %p64 = scmp.eq.s32.totalorder %s63, 0
      %s66 = sadd.s32 %s65, 1
      %s67 = scalar_select %p64, %s65, %s66
      %p70 = pneg %p64
      %p71 = scmp.eq.s32.totalorder %s15, 1
      %p72 = por %p70, %p71
      %p73 = scmp.ne.s32.totalorder %s65, %s68
      %p74 = scmp.eq.s32.totalorder %s15, 0
      %p75 = por %p73, %p74
      %p76 = scmp.ne.s32.totalorder %s65, %s68
      %p77 = scmp.eq.s32.totalorder %s20, 1
      %p78 = por %p76, %p77
      %p79 = scmp.ne.s32.totalorder %s68, %s69
      %p80 = scmp.eq.s32.totalorder %s20, 0
      %p81 = por %p79, %p80
      %p82 = scmp.ne.s32.totalorder %s68, %s69
      %p83 = scmp.eq.s32.totalorder %s21, 1
      %p84 = por %p82, %p83
      %p86 = scmp.ne.s32.totalorder %s69, %s85
      %p87 = scmp.eq.s32.totalorder %s21, 0
      %p88 = por %p86, %p87
      %s90 = sadd.s32 %s89, 1
      %p93 = scmp.eq.s32.totalorder %s15, 1
      %p94 = scmp.ne.s32.totalorder %s89, %s91
      %p95 = scmp.eq.s32.totalorder %s15, 0
      %p96 = por %p94, %p95
      %p97 = scmp.ne.s32.totalorder %s89, %s91
      %p98 = scmp.eq.s32.totalorder %s20, 1
      %p99 = por %p97, %p98
      %p100 = scmp.ne.s32.totalorder %s91, %s92
      %p101 = scmp.eq.s32.totalorder %s20, 0
      %p102 = por %p100, %p101
      %p103 = scmp.ne.s32.totalorder %s91, %s92
      %p104 = scmp.eq.s32.totalorder %s21, 1
      %p105 = por %p103, %p104
      %p107 = scmp.ne.s32.totalorder %s92, %s106
      %p108 = scmp.eq.s32.totalorder %s21, 0
      %p109 = por %p107, %p108
      %s111 = sadd.s32 %s110, 1
      %p114 = scmp.eq.s32.totalorder %s15, 1
      %p115 = scmp.ne.s32.totalorder %s110, %s112
      %p116 = scmp.eq.s32.totalorder %s15, 0
      %p117 = por %p115, %p116
      %p118 = scmp.ne.s32.totalorder %s110, %s112
      %p119 = scmp.eq.s32.totalorder %s20, 1
      %p120 = por %p118, %p119
      %p121 = scmp.ne.s32.totalorder %s112, %s113
      %p122 = scmp.eq.s32.totalorder %s20, 0
      %p123 = por %p121, %p122
      %p124 = scmp.ne.s32.totalorder %s112, %s113
      %p125 = scmp.eq.s32.totalorder %s21, 1
      %p126 = por %p124, %p125
      %p128 = scmp.ne.s32.totalorder %s113, %s127
      %p129 = scmp.eq.s32.totalorder %s21, 0
      %p130 = por %p128, %p129
      %s132 = sadd.s32 %s131, 1
      %p135 = scmp.eq.s32.totalorder %s15, 1
      %p136 = scmp.ne.s32.totalorder %s131, %s133
      %p137 = scmp.eq.s32.totalorder %s15, 0
      %p138 = por %p136, %p137
      %p139 = scmp.ne.s32.totalorder %s131, %s133
      %p140 = scmp.eq.s32.totalorder %s20, 1
      %p141 = por %p139, %p140
      %p142 = scmp.ne.s32.totalorder %s133, %s134
      %p143 = scmp.eq.s32.totalorder %s20, 0
      %p144 = por %p142, %p143
      %p145 = scmp.ne.s32.totalorder %s133, %s134
      %p146 = scmp.eq.s32.totalorder %s21, 1
      %p147 = por %p145, %p146
      %p149 = scmp.ne.s32.totalorder %s134, %s148
      %p150 = scmp.eq.s32.totalorder %s21, 0
      %p151 = por %p149, %p150
      %s153 = sadd.s32 %s152, 1
      %p156 = scmp.eq.s32.totalorder %s15, 1
      %p157 = scmp.ne.s32.totalorder %s152, %s154
      %p158 = scmp.eq.s32.totalorder %s15, 0
      %p159 = por %p157, %p158
      %p160 = scmp.ne.s32.totalorder %s152, %s154
      %p161 = scmp.eq.s32.totalorder %s20, 1
      %p162 = por %p160, %p161
      %p163 = scmp.ne.s32.totalorder %s154, %s155
      %p164 = scmp.eq.s32.totalorder %s20, 0
      %p165 = por %p163, %p164
      %p166 = scmp.ne.s32.totalorder %s154, %s155
      %p167 = scmp.eq.s32.totalorder %s21, 1
      %p168 = por %p166, %p167
      %p170 = scmp.ne.s32.totalorder %s155, %s169
      %p171 = scmp.eq.s32.totalorder %s21, 0
      %p172 = por %p170, %p171
      %s174 = sadd.s32 %s173, 1
      %p177 = scmp.eq.s32.totalorder %s15, 1
      %p178 = scmp.ne.s32.totalorder %s173, %s175
      %p179 = scmp.eq.s32.totalorder %s15, 0
      %p180 = por %p178, %p179
      %p181 = scmp.ne.s32.totalorder %s173, %s175
      %p182 = scmp.eq.s32.totalorder %s20, 1
      %p183 = por %p181, %p182
      %p184 = scmp.ne.s32.totalorder %s175, %s176
      %p185 = scmp.eq.s32.totalorder %s20, 0
      %p186 = por %p184, %p185
      %p187 = scmp.ne.s32.totalorder %s175, %s176
      %p188 = scmp.eq.s32.totalorder %s21, 1
      %p189 = por %p187, %p188
      %p191 = scmp.ne.s32.totalorder %s176, %s190
      %p192 = scmp.eq.s32.totalorder %s21, 0
      %p193 = por %p191, %p192
      %s194 = ssub.s32 %s22, %s34
      %p195 = scmp.eq.s32.totalorder %s194, 0
      %s197 = sadd.s32 %s196, 1
      %s198 = scalar_select %p195, %s196, %s197
      %p201 = pneg %p195
      %p202 = scmp.eq.s32.totalorder %s15, 1
      %p203 = por %p201, %p202
      %p204 = scmp.ne.s32.totalorder %s196, %s199
      %p205 = scmp.eq.s32.totalorder %s15, 0
      %p206 = por %p204, %p205
      %p207 = scmp.ne.s32.totalorder %s196, %s199
      %p208 = scmp.eq.s32.totalorder %s20, 1
      %p209 = por %p207, %p208
      %p210 = scmp.ne.s32.totalorder %s199, %s200
      %p211 = scmp.eq.s32.totalorder %s20, 0
      %p212 = por %p210, %p211
      %p213 = scmp.ne.s32.totalorder %s199, %s200
      %p214 = scmp.eq.s32.totalorder %s21, 1
      %p215 = por %p213, %p214
      %p217 = scmp.ne.s32.totalorder %s200, %s216
      %p218 = scmp.eq.s32.totalorder %s21, 0
      %p219 = por %p217, %p218
      %s220 = ssub.s32 %s22, %s34
      %p221 = scmp.eq.s32.totalorder %s220, 0
      %s223 = sadd.s32 %s222, 1
      %s224 = scalar_select %p221, %s222, %s223
      %p227 = pneg %p221
      %p228 = scmp.eq.s32.totalorder %s15, 1
      %p229 = por %p227, %p228
      %p230 = scmp.ne.s32.totalorder %s222, %s225
      %p231 = scmp.eq.s32.totalorder %s15, 0
      %p232 = por %p230, %p231
      %p233 = scmp.ne.s32.totalorder %s222, %s225
      %p234 = scmp.eq.s32.totalorder %s20, 1
      %p235 = por %p233, %p234
      %p236 = scmp.ne.s32.totalorder %s225, %s226
      %p237 = scmp.eq.s32.totalorder %s20, 0
      %p238 = por %p236, %p237
      %p239 = scmp.ne.s32.totalorder %s225, %s226
      %p240 = scmp.eq.s32.totalorder %s21, 1
      %p241 = por %p239, %p240
      %p243 = scmp.ne.s32.totalorder %s226, %s242
      %p244 = scmp.eq.s32.totalorder %s21, 0
      %p245 = por %p243, %p244
      %p246 = scmp.le.s32.totalorder 1, %s15
      %p247 = scmp.lt.s32.totalorder %s15, 3
      %p248 = pnand %p246, %p247
      %p249 = pneg %p248
      // Predicated region
      $region9: #{simclr_forward.1} parent=5 // pred_check
        _
      $region10: #{simclr_forward.1} parent=5 // pred_check_branch
        %251 = sbr.rel (%p248) target = $region12
      $region11: #{simclr_forward.1} parent=5 // pred_region
        %s252 = ssub.s32 %s15, 1
        // Predicated region
        $region13: #{simclr_forward.1} parent=11 // pred_check
          %p253 = pneg %p102
        $region14: #{simclr_forward.1} parent=11 // pred_check_branch
          %255 = sbr.rel (%p253) target = $region16
        $region15: #{simclr_forward.1} parent=11 // pred_region
          _
        $region16: #{simclr_forward.1} parent=11 // pred_fallthru
          _
        // Predicated region
        $region17: #{simclr_forward.1} parent=11 // pred_check
          %p256 = pneg %p123
        $region18: #{simclr_forward.1} parent=11 // pred_check_branch
          %258 = sbr.rel (%p256) target = $region20
        $region19: #{simclr_forward.1} parent=11 // pred_region
          _
        $region20: #{simclr_forward.1} parent=11 // pred_fallthru
          _
        // Predicated region
        $region21: #{simclr_forward.1} parent=11 // pred_check
          %p259 = pneg %p144
        $region22: #{simclr_forward.1} parent=11 // pred_check_branch
          %261 = sbr.rel (%p259) target = $region24
        $region23: #{simclr_forward.1} parent=11 // pred_region
          _
        $region24: #{simclr_forward.1} parent=11 // pred_fallthru
          _
        // Predicated region
        $region25: #{simclr_forward.1} parent=11 // pred_check
          %p262 = pneg %p165
        $region26: #{simclr_forward.1} parent=11 // pred_check_branch
          %264 = sbr.rel (%p262) target = $region28
        $region27: #{simclr_forward.1} parent=11 // pred_region
          _
        $region28: #{simclr_forward.1} parent=11 // pred_fallthru
          _
        // Predicated region
        $region29: #{simclr_forward.1} parent=11 // pred_check
          %p265 = pneg %p186
        $region30: #{simclr_forward.1} parent=11 // pred_check_branch
          %267 = sbr.rel (%p265) target = $region32
        $region31: #{simclr_forward.1} parent=11 // pred_region
          _
        $region32: #{simclr_forward.1} parent=11 // pred_fallthru
          _
      $region12: #{simclr_forward.1} parent=5 // pred_fallthru
        _
      %p268 = scmp.lt.s32.totalorder %s15, 2
      // Predicated region
      $region33: #{simclr_forward.1} parent=5 // pred_check
        %p269 = pneg %p268
      $region34: #{simclr_forward.1} parent=5 // pred_check_branch
        %271 = sbr.rel (%p269) target = $region36
      $region35: #{simclr_forward.1} parent=5 // pred_region
        // Predicated region
        $region37: #{simclr_forward.1} parent=35 // pred_check
          %p272 = pneg %p49
        $region38: #{simclr_forward.1} parent=35 // pred_check_branch
          %274 = sbr.rel (%p272) target = $region40
        $region39: #{simclr_forward.1} parent=35 // pred_region
          %s275 = sand.u32 %s39, 1
          %s276 = sand.u32 %s39, 1
          %s277 = smul.addr %s276, 32
          %s278 = scalar_lea.vmem [#allocation3], %s277
          %s279 = smul.u32 2, %s22
          %s280 = smul.u32 4, %s23
          %s281 = smul.addr %s279, 8
          %s282 = sadd.s32 %s280, %s281
          %s283 = smul.addr %s282, 4
          %s284 = scalar_lea.vmem %s0, %s283
          // Predicated region
          $region41: #{simclr_forward.1} parent=39 // pred_check
            _
          $region42: #{simclr_forward.1} parent=39 // pred_check_branch
            %286 = sbr.rel (0) target = $region44
          $region43: #{simclr_forward.1} parent=39 // pred_region
            // Predicated region
            $region45: #{simclr_forward.1} parent=43 // pred_check
              _
            $region46: #{simclr_forward.1} parent=43 // pred_check_branch
              %288 = sbr.rel (0) target = $region48
            $region47: #{simclr_forward.1} parent=43 // pred_region
              loop: start=0, step=1, limit=1
              $region49: #{simclr_forward.1} parent=47 // loop_pre_header
                _
              $region50: #{simclr_forward.1} parent=47 // loop_header
                %s290 = sphi 0, %s294
                %p291 = scmp.ge.s32.totalorder %s290, 1
                %s295 = sphi %s284, %s284
                %s296 = sphi %s278, %s278
              $region51: #{simclr_forward.1} parent=47 // loop_header_branch
                %293 = sbr.rel (%p291) target = $region55
              $region52: #{simclr_forward.1} parent=47 // loop_body
                %v297 = vld [vmem:[%s295] sm:$0xff]
                %298 = vst [vmem:[%s296] sm:$0xff] %v297
                %v299 = vld [vmem:[%s295 + $0x8] sm:$0xff]
                %300 = vst [vmem:[%s296 + $0x8] sm:$0xff] %v299
                %v301 = vld [vmem:[%s295 + $0x20] sm:$0xff]
                %302 = vst [vmem:[%s296 + $0x10] sm:$0xff] %v301
                %v303 = vld [vmem:[%s295 + $0x28] sm:$0xff]
                %304 = vst [vmem:[%s296 + $0x18] sm:$0xff] %v303
              $region53: #{simclr_forward.1} parent=47 // loop_footer
                %s294 = sadd.s32 1, %s290
              $region54: #{simclr_forward.1} parent=47 // loop_footer_branch
                %289 = sbr.rel target = $region50
              $region55: #{simclr_forward.1} parent=47 // loop_exit
                _
            $region48: #{simclr_forward.1} parent=43 // pred_fallthru
              _
            // Predicated region
            $region56: #{simclr_forward.1} parent=43 // pred_check
              _
            $region57: #{simclr_forward.1} parent=43 // pred_check_branch
              %306 = sbr.rel target = $region59
            $region58: #{simclr_forward.1} parent=43 // pred_region
              _
            $region59: #{simclr_forward.1} parent=43 // pred_fallthru
              _
          $region44: #{simclr_forward.1} parent=39 // pred_fallthru
            _
          %307 = vnop
        $region40: #{simclr_forward.1} parent=35 // pred_fallthru
          _
        // Predicated region
        $region60: #{simclr_forward.1} parent=35 // pred_check
          %p308 = pneg %p75
        $region61: #{simclr_forward.1} parent=35 // pred_check_branch
          %310 = sbr.rel (%p308) target = $region63
        $region62: #{simclr_forward.1} parent=35 // pred_region
          %s311 = smul.u32 64, %s23
          %p312 = scmp.lt.s32.totalorder %s311, 127
          %s313 = scalar_select %p312, %s311, 127
          %s314 = smul.addr %s313, 4
          %s315 = scalar_lea.vmem %s1, %s314
          %s316 = smul.u32 64, %s23
        $region63: #{simclr_forward.1} parent=35 // pred_fallthru
          _
      $region36: #{simclr_forward.1} parent=5 // pred_fallthru
        _
      %p317 = scmp.le.s32.totalorder 1, %s15
      %p318 = scmp.lt.s32.totalorder %s15, 3
      %p319 = pnand %p317, %p318
      %p320 = pneg %p319
      // Predicated region
      $region64: #{simclr_forward.1} parent=5 // pred_check
        _
      $region65: #{simclr_forward.1} parent=5 // pred_check_branch
        %322 = sbr.rel (%p319) target = $region67
      $region66: #{simclr_forward.1} parent=5 // pred_region
        %s323 = ssub.s32 %s15, 1
        %s324 = sand.u32 %s42, 1
        %s325 = sand.u32 %s42, 1
        %s326 = smul.addr %s325, 32
        %s327 = scalar_lea.vmem [#allocation3], %s326
        // Predicated region
        $region68: #{simclr_forward.1} parent=66 // pred_check
          %p328 = pneg %p55
        $region69: #{simclr_forward.1} parent=66 // pred_check_branch
          %330 = sbr.rel (%p328) target = $region71
        $region70: #{simclr_forward.1} parent=66 // pred_region
          _
        $region71: #{simclr_forward.1} parent=66 // pred_fallthru
          _
        %s331 = sand.u32 %s42, 1
        %s332 = sand.u32 %s42, 1
        %s333 = smul.addr %s332, 32
        %s334 = scalar_lea.vmem [#allocation3], %s333
        %p335 = pneg %p55
        %p336 = pneg %p52
        %s337 = smul.u32 64, %s25
        %p338 = scmp.lt.s32.totalorder %s337, 127
        %s339 = scalar_select %p338, %s337, 127
        %s340 = smul.addr %s339, 4
        %s341 = scalar_lea.vmem %s1, %s340
        %p342 = pneg %p81
        %p343 = pneg %p78
        %p344 = pneg %p102
        %p345 = pneg %p99
        %p346 = pneg %p123
        %p347 = pneg %p120
        %p348 = pneg %p144
        %p349 = pneg %p141
        %p350 = pneg %p165
        %p351 = pneg %p162
        %p352 = pneg %p186
        %p353 = pneg %p183
        %p354 = pneg %p212
        %p355 = pneg %p209
        %s356 = smul.u32 2, %s24
        %p357 = scmp.lt.s32.totalorder %s356, 1
        %s358 = scalar_select %p357, %s356, 1
        %s359 = smul.addr %s358, 8
        %s360 = scalar_lea.vmem %s7, %s359
        %p361 = pneg %p238
        %p362 = pneg %p235
        %s363 = smul.u32 2, %s24
        %p364 = scmp.lt.s32.totalorder %s363, 1
        %s365 = scalar_select %p364, %s363, 1
        %s366 = smul.addr %s365, 8
        %s367 = scalar_lea.vmem %s8, %s366
        %s368 = smul.u32 2, %s24
        %s369 = smul.u32 4, %s25
        %s370 = smul.u32 64, %s25
        %p371 = scmp.lt.s32.totalorder %s370, 127
        %s372 = scalar_select %p371, %s370, 127
        %s373 = smul.addr %s372, 4
        %s374 = scalar_lea.vmem %s1, %s373
        %s375 = smul.u32 64, %s25
        %s376 = smul.u32 2, %s24
        %p377 = scmp.lt.s32.totalorder %s376, 1
        %s378 = scalar_select %p377, %s376, 1
        %s379 = smul.addr %s378, 8
        %s380 = scalar_lea.vmem %s7, %s379
        %s381 = smul.u32 2, %s24
        %s382 = smul.u32 2, %s24
        %p383 = scmp.lt.s32.totalorder %s382, 1
        %s384 = scalar_select %p383, %s382, 1
        %s385 = smul.addr %s384, 8
        %s386 = scalar_lea.vmem %s8, %s385
        %s387 = smul.u32 2, %s24
        %p389 = scmp.eq.s32.totalorder %s25, 0
        // Predicated region
        $region72: #{simclr_forward.1} parent=66 // pred_check
          %p390 = pneg %p389
        $region73: #{simclr_forward.1} parent=66 // pred_check_branch
          %392 = sbr.rel (%p390) target = $region75
        $region74: #{simclr_forward.1} parent=66 // pred_region
          %393 = vst [vmem:[#allocation2] sm:$0xff] 0.0
          %394 = vst [vmem:[#allocation2 + $0x8] sm:$0xff] 0.0
        $region75: #{simclr_forward.1} parent=66 // pred_fallthru
          _
        %v395 = vld [vmem:[#allocation2] sm:$0xff]
        %v396 = vld [vmem:[#allocation2 + $0x8] sm:$0xff]
        %v397 = vld [vmem:[%s327] sm:$0xff]
        %v398 = vld [vmem:[%s327 + $0x8] sm:$0xff]
        %v399 = vld [vmem:[%s327 + $0x10] sm:$0xff]
        %v400 = vld [vmem:[%s327 + $0x18] sm:$0xff]
        %v401 = vld [vmem:[%s374] sm:$0xf]
        %v402 = vld [vmem:[%s374 + $0x4] sm:$0xf]
        %v403 = vld [vmem:[%s374 + $0x8] sm:$0xf]
        %v404 = vld [vmem:[%s374 + $0xc] sm:$0xf]
        %v405 = vld [vmem:[%s374 + $0x10] sm:$0xf]
        %v406 = vld [vmem:[%s374 + $0x14] sm:$0xf]
        %v407 = vld [vmem:[%s374 + $0x18] sm:$0xf]
        %v408 = vld [vmem:[%s374 + $0x1c] sm:$0xf]
        %v409 = vld [vmem:[%s374 + $0x20] sm:$0xf]
        %v410 = vld [vmem:[%s374 + $0x24] sm:$0xf]
        %v411 = vld [vmem:[%s374 + $0x28] sm:$0xf]
        %v412 = vld [vmem:[%s374 + $0x2c] sm:$0xf]
        %v413 = vld [vmem:[%s374 + $0x30] sm:$0xf]
        %v414 = vld [vmem:[%s374 + $0x34] sm:$0xf]
        %v415 = vld [vmem:[%s374 + $0x38] sm:$0xf]
        %v416 = vld [vmem:[%s374 + $0x3c] sm:$0xf]
        %v417 = vld [vmem:[%s374 + $0x40] sm:$0xf]
        %v418 = vld [vmem:[%s374 + $0x44] sm:$0xf]
        %v419 = vld [vmem:[%s374 + $0x48] sm:$0xf]
        %v420 = vld [vmem:[%s374 + $0x4c] sm:$0xf]
        %v421 = vld [vmem:[%s374 + $0x50] sm:$0xf]
        %v422 = vld [vmem:[%s374 + $0x54] sm:$0xf]
        %v423 = vld [vmem:[%s374 + $0x58] sm:$0xf]
        %v424 = vld [vmem:[%s374 + $0x5c] sm:$0xf]
        %v425 = vld [vmem:[%s374 + $0x60] sm:$0xf]
        %v426 = vld [vmem:[%s374 + $0x64] sm:$0xf]
        %v427 = vld [vmem:[%s374 + $0x68] sm:$0xf]
        %v428 = vld [vmem:[%s374 + $0x6c] sm:$0xf]
        %v429 = vld [vmem:[%s374 + $0x70] sm:$0xf]
        %v430 = vld [vmem:[%s374 + $0x74] sm:$0xf]
        %v431 = vld [vmem:[%s374 + $0x78] sm:$0xf]
        %v432 = vld [vmem:[%s374 + $0x7c] sm:$0xf]
        %v433 = vld [vmem:[%s374 + $0x80] sm:$0xf]
        %v434 = vld [vmem:[%s374 + $0x84] sm:$0xf]
        %v435 = vld [vmem:[%s374 + $0x88] sm:$0xf]
        %v436 = vld [vmem:[%s374 + $0x8c] sm:$0xf]
        %v437 = vld [vmem:[%s374 + $0x90] sm:$0xf]
        %v438 = vld [vmem:[%s374 + $0x94] sm:$0xf]
        %v439 = vld [vmem:[%s374 + $0x98] sm:$0xf]
        %v440 = vld [vmem:[%s374 + $0x9c] sm:$0xf]
        %v441 = vld [vmem:[%s374 + $0xa0] sm:$0xf]
        %v442 = vld [vmem:[%s374 + $0xa4] sm:$0xf]
        %v443 = vld [vmem:[%s374 + $0xa8] sm:$0xf]
        %v444 = vld [vmem:[%s374 + $0xac] sm:$0xf]
        %v445 = vld [vmem:[%s374 + $0xb0] sm:$0xf]
        %v446 = vld [vmem:[%s374 + $0xb4] sm:$0xf]
        %v447 = vld [vmem:[%s374 + $0xb8] sm:$0xf]
        %v448 = vld [vmem:[%s374 + $0xbc] sm:$0xf]
        %v449 = vld [vmem:[%s374 + $0xc0] sm:$0xf]
        %v450 = vld [vmem:[%s374 + $0xc4] sm:$0xf]
        %v451 = vld [vmem:[%s374 + $0xc8] sm:$0xf]
        %v452 = vld [vmem:[%s374 + $0xcc] sm:$0xf]
        %v453 = vld [vmem:[%s374 + $0xd0] sm:$0xf]
        %v454 = vld [vmem:[%s374 + $0xd4] sm:$0xf]
        %v455 = vld [vmem:[%s374 + $0xd8] sm:$0xf]
        %v456 = vld [vmem:[%s374 + $0xdc] sm:$0xf]
        %v457 = vld [vmem:[%s374 + $0xe0] sm:$0xf]
        %v458 = vld [vmem:[%s374 + $0xe4] sm:$0xf]
        %v459 = vld [vmem:[%s374 + $0xe8] sm:$0xf]
        %v460 = vld [vmem:[%s374 + $0xec] sm:$0xf]
        %v461 = vld [vmem:[%s374 + $0xf0] sm:$0xf]
        %v462 = vld [vmem:[%s374 + $0xf4] sm:$0xf]
        %v463 = vld [vmem:[%s374 + $0xf8] sm:$0xf]
        %v464 = vld [vmem:[%s374 + $0xfc] sm:$0xf]
        %v469 = vunpack.c.l.b16 %v397
        %v470 = vunpack.c.h.b16 %v397
        %v471 = vunpack.c.l.b16 %v398
        %v472 = vunpack.c.h.b16 %v398
        %v473 = vunpack.c.l.b16 %v399
        %v474 = vunpack.c.h.b16 %v399
        %v475 = vunpack.c.l.b16 %v400
        %v476 = vunpack.c.h.b16 %v400
        %v477 = vpack.c.b16 %v473, %v469
        %v478 = vpack.c.b16 %v474, %v470
        %v479 = vpack.c.b16 %v475, %v471
        %v480 = vpack.c.b16 %v476, %v472
        %v549 = vunpack.c.l.b16 %v401
        %v550 = vunpack.c.l.b16 %v402
        %v551 = vunpack.c.l.b16 %v403
        %v552 = vunpack.c.l.b16 %v404
        %v553 = vunpack.c.l.b16 %v405
        %v554 = vunpack.c.l.b16 %v406
        %v555 = vunpack.c.l.b16 %v407
        %v556 = vunpack.c.l.b16 %v408
        %v557 = vunpack.c.l.b16 %v409
        %v558 = vunpack.c.l.b16 %v410
        %v559 = vunpack.c.l.b16 %v411
        %v560 = vunpack.c.l.b16 %v412
        %v561 = vunpack.c.l.b16 %v413
        %v562 = vunpack.c.l.b16 %v414
        %v563 = vunpack.c.l.b16 %v415
        %v564 = vunpack.c.l.b16 %v416
        %v565 = vunpack.c.l.b16 %v417
        %v566 = vunpack.c.l.b16 %v418
        %v567 = vunpack.c.l.b16 %v419
        %v568 = vunpack.c.l.b16 %v420
        %v569 = vunpack.c.l.b16 %v421
        %v570 = vunpack.c.l.b16 %v422
        %v571 = vunpack.c.l.b16 %v423
        %v572 = vunpack.c.l.b16 %v424
        %v573 = vunpack.c.l.b16 %v425
        %v574 = vunpack.c.l.b16 %v426
        %v575 = vunpack.c.l.b16 %v427
        %v576 = vunpack.c.l.b16 %v428
        %v577 = vunpack.c.l.b16 %v429
        %v578 = vunpack.c.l.b16 %v430
        %v579 = vunpack.c.l.b16 %v431
        %v580 = vunpack.c.l.b16 %v432
        %v581 = vunpack.c.l.b16 %v433
        %v582 = vunpack.c.l.b16 %v434
        %v583 = vunpack.c.l.b16 %v435
        %v584 = vunpack.c.l.b16 %v436
        %v585 = vunpack.c.l.b16 %v437
        %v586 = vunpack.c.l.b16 %v438
        %v587 = vunpack.c.l.b16 %v439
        %v588 = vunpack.c.l.b16 %v440
        %v589 = vunpack.c.l.b16 %v441
        %v590 = vunpack.c.l.b16 %v442
        %v591 = vunpack.c.l.b16 %v443
        %v592 = vunpack.c.l.b16 %v444
        %v593 = vunpack.c.l.b16 %v445
        %v594 = vunpack.c.l.b16 %v446
        %v595 = vunpack.c.l.b16 %v447
        %v596 = vunpack.c.l.b16 %v448
        %v597 = vunpack.c.l.b16 %v449
        %v598 = vunpack.c.l.b16 %v450
        %v599 = vunpack.c.l.b16 %v451
        %v600 = vunpack.c.l.b16 %v452
        %v601 = vunpack.c.l.b16 %v453
        %v602 = vunpack.c.l.b16 %v454
        %v603 = vunpack.c.l.b16 %v455
        %v604 = vunpack.c.l.b16 %v456
        %v605 = vunpack.c.l.b16 %v457
        %v606 = vunpack.c.l.b16 %v458
        %v607 = vunpack.c.l.b16 %v459
        %v608 = vunpack.c.l.b16 %v460
        %v609 = vunpack.c.l.b16 %v461
        %v610 = vunpack.c.l.b16 %v462
        %v611 = vunpack.c.l.b16 %v463
        %v612 = vunpack.c.l.b16 %v464
        %v613 = vpack.c.b16 %v550, %v549
        %v614 = vpack.c.b16 %v552, %v551
        %v615 = vpack.c.b16 %v554, %v553
        %v616 = vpack.c.b16 %v556, %v555
        %v617 = vpack.c.b16 %v558, %v557
        %v618 = vpack.c.b16 %v560, %v559
        %v619 = vpack.c.b16 %v562, %v561
        %v620 = vpack.c.b16 %v564, %v563
        %v621 = vpack.c.b16 %v566, %v565
        %v622 = vpack.c.b16 %v568, %v567
        %v623 = vpack.c.b16 %v570, %v569
        %v624 = vpack.c.b16 %v572, %v571
        %v625 = vpack.c.b16 %v574, %v573
        %v626 = vpack.c.b16 %v576, %v575
        %v627 = vpack.c.b16 %v578, %v577
        %v628 = vpack.c.b16 %v580, %v579
        %v629 = vpack.c.b16 %v582, %v581
        %v630 = vpack.c.b16 %v584, %v583
        %v631 = vpack.c.b16 %v586, %v585
        %v632 = vpack.c.b16 %v588, %v587
        %v633 = vpack.c.b16 %v590, %v589
        %v634 = vpack.c.b16 %v592, %v591
        %v635 = vpack.c.b16 %v594, %v593
        %v636 = vpack.c.b16 %v596, %v595
        %v637 = vpack.c.b16 %v598, %v597
        %v638 = vpack.c.b16 %v600, %v599
        %v639 = vpack.c.b16 %v602, %v601
        %v640 = vpack.c.b16 %v604, %v603
        %v641 = vpack.c.b16 %v606, %v605
        %v642 = vpack.c.b16 %v608, %v607
        %v643 = vpack.c.b16 %v610, %v609
        %v644 = vpack.c.b16 %v612, %v611
        %677 = vmatprep.subr.bf16.mxu0 0
        %678 = vmatpush1.bf16.msra.mxu0 %v613
        %679 = vmatprep.subr.bf16.mxu0 0
        %680 = vmatpush1.bf16.msra.mxu0 %v614
        %681 = vmatprep.subr.bf16.mxu0 0
        %682 = vmatpush1.bf16.msra.mxu0 %v615
        %683 = vmatprep.subr.bf16.mxu0 0
        %684 = vmatpush1.bf16.msra.mxu0 %v616
        %685 = vmatprep.subr.bf16.mxu0 0
        %686 = vmatpush1.bf16.msra.mxu0 %v617
        %687 = vmatprep.subr.bf16.mxu0 0
        %688 = vmatpush1.bf16.msra.mxu0 %v618
        %689 = vmatprep.subr.bf16.mxu0 0
        %690 = vmatpush1.bf16.msra.mxu0 %v619
        %691 = vmatprep.subr.bf16.mxu0 0
        %692 = vmatpush1.bf16.msra.mxu0 %v620
        %693 = vmatprep.subr.bf16.mxu0 0
        %694 = vmatpush1.bf16.msra.mxu0 %v621
        %695 = vmatprep.subr.bf16.mxu0 0
        %696 = vmatpush1.bf16.msra.mxu0 %v622
        %697 = vmatprep.subr.bf16.mxu0 0
        %698 = vmatpush1.bf16.msra.mxu0 %v623
        %699 = vmatprep.subr.bf16.mxu0 0
        %700 = vmatpush1.bf16.msra.mxu0 %v624
        %701 = vmatprep.subr.bf16.mxu0 0
        %702 = vmatpush1.bf16.msra.mxu0 %v625
        %703 = vmatprep.subr.bf16.mxu0 0
        %704 = vmatpush1.bf16.msra.mxu0 %v626
        %705 = vmatprep.subr.bf16.mxu0 0
        %706 = vmatpush1.bf16.msra.mxu0 %v627
        %707 = vmatprep.subr.bf16.mxu0 0
        %708 = vmatpush1.bf16.msra.mxu0 %v628
        %709 = vmatprep.mubr.bf16.mxu0 %v478
        %710 = vmatmul.mubr.bf16.gmra.mrb[0].mxu0 %v477
        %v711 = vpop.f32.mrb[0].mxu0
        %v712 = vadd.f32 0.0, %v711
        %v713 = vpop.f32.mrb[0].mxu0
        %v714 = vpop.f32.mrb[0].mxu0
        %v715 = vadd.f32 0.0, %v714
        %v716 = vpop.f32.mrb[0].mxu0
        %717 = vdwg.mxu0
        %718 = vmatprep.subr.bf16.mxu0 0
        %719 = vmatpush1.bf16.msra.mxu0 %v629
        %720 = vmatprep.subr.bf16.mxu0 0
        %721 = vmatpush1.bf16.msra.mxu0 %v630
        %722 = vmatprep.subr.bf16.mxu0 0
        %723 = vmatpush1.bf16.msra.mxu0 %v631
        %724 = vmatprep.subr.bf16.mxu0 0
        %725 = vmatpush1.bf16.msra.mxu0 %v632
        %726 = vmatprep.subr.bf16.mxu0 0
        %727 = vmatpush1.bf16.msra.mxu0 %v633
        %728 = vmatprep.subr.bf16.mxu0 0
        %729 = vmatpush1.bf16.msra.mxu0 %v634
        %730 = vmatprep.subr.bf16.mxu0 0
        %731 = vmatpush1.bf16.msra.mxu0 %v635
        %732 = vmatprep.subr.bf16.mxu0 0
        %733 = vmatpush1.bf16.msra.mxu0 %v636
        %734 = vmatprep.subr.bf16.mxu0 0
        %735 = vmatpush1.bf16.msra.mxu0 %v637
        %736 = vmatprep.subr.bf16.mxu0 0
        %737 = vmatpush1.bf16.msra.mxu0 %v638
        %738 = vmatprep.subr.bf16.mxu0 0
        %739 = vmatpush1.bf16.msra.mxu0 %v639
        %740 = vmatprep.subr.bf16.mxu0 0
        %741 = vmatpush1.bf16.msra.mxu0 %v640
        %742 = vmatprep.subr.bf16.mxu0 0
        %743 = vmatpush1.bf16.msra.mxu0 %v641
        %744 = vmatprep.subr.bf16.mxu0 0
        %745 = vmatpush1.bf16.msra.mxu0 %v642
        %746 = vmatprep.subr.bf16.mxu0 0
        %747 = vmatpush1.bf16.msra.mxu0 %v643
        %748 = vmatprep.subr.bf16.mxu0 0
        %749 = vmatpush1.bf16.msra.mxu0 %v644
        %750 = vmatprep.mubr.bf16.mxu0 %v480
        %751 = vmatmul.mubr.bf16.gmra.mrb[0].mxu0 %v479
        %v752 = vpop.f32.mrb[0].mxu0
        %v753 = vadd.f32 %v712, %v752
        %v754 = vpop.f32.mrb[0].mxu0
        %v755 = vpop.f32.mrb[0].mxu0
        %v756 = vadd.f32 %v715, %v755
        %v757 = vpop.f32.mrb[0].mxu0
        %758 = vdwg.mxu0
        %v759 = vadd.f32 %v395, %v753
        %v760 = vadd.f32 %v396, %v756
        %761 = vst [vmem:[#allocation2] sm:$0xff] %v759
        %762 = vst [vmem:[#allocation2 + $0x8] sm:$0xff] %v760
        %p763 = scmp.eq.s32.totalorder %s25, 1
        // Predicated region
        $region76: #{simclr_forward.1} parent=66 // pred_check
          %p764 = pneg %p763
        $region77: #{simclr_forward.1} parent=66 // pred_check_branch
          %766 = sbr.rel (%p764) target = $region79
        $region78: #{simclr_forward.1} parent=66 // pred_region
          %v767 = vld [vmem:[#allocation2] sm:$0xff]
          %v768 = vld [vmem:[#allocation2 + $0x8] sm:$0xff]
          %v769 = vld [vmem:[%s2] sm:$0x1]
          %v771 = vlaneseq
          %v772 = vshrl.u32 %v771, 7
          %v773 = vsub.s32 0, %v772
          %v774 = vrot.slane %v769, %v773
          %v776 = vadd.f32 %v767, %v774
          %v777 = vadd.f32 %v768, %v774
          %778 = vst [vmem:[%s380] sm:$0xff] %v776
          %779 = vst [vmem:[%s380 + $0x8] sm:$0xff] %v777
          %v780 = vpack.c.bf16 %v777, %v776
          %v781 = vld [vmem:[%s3] sm:$0xff]
          %v782 = vld [vmem:[%s3 + $0x8] sm:$0xff]
          %v783 = vld [vmem:[%s3 + $0x10] sm:$0xff]
          %v784 = vld [vmem:[%s3 + $0x18] sm:$0xff]
          %v785 = vld [vmem:[%s3 + $0x20] sm:$0xff]
          %v786 = vld [vmem:[%s3 + $0x28] sm:$0xff]
          %v787 = vld [vmem:[%s3 + $0x30] sm:$0xff]
          %v788 = vld [vmem:[%s3 + $0x38] sm:$0xff]
          %v789 = vld [vmem:[%s3 + $0x40] sm:$0xff]
          %v790 = vld [vmem:[%s3 + $0x48] sm:$0xff]
          %v791 = vld [vmem:[%s3 + $0x50] sm:$0xff]
          %v792 = vld [vmem:[%s3 + $0x58] sm:$0xff]
          %v793 = vld [vmem:[%s3 + $0x60] sm:$0xff]
          %v794 = vld [vmem:[%s3 + $0x68] sm:$0xff]
          %v795 = vld [vmem:[%s3 + $0x70] sm:$0xff]
          %v796 = vld [vmem:[%s3 + $0x78] sm:$0xff]
          %v797 = vld [vmem:[%s3 + $0x80] sm:$0xff]
          %v798 = vld [vmem:[%s3 + $0x88] sm:$0xff]
          %v799 = vld [vmem:[%s3 + $0x90] sm:$0xff]
          %v800 = vld [vmem:[%s3 + $0x98] sm:$0xff]
          %v801 = vld [vmem:[%s3 + $0xa0] sm:$0xff]
          %v802 = vld [vmem:[%s3 + $0xa8] sm:$0xff]
          %v803 = vld [vmem:[%s3 + $0xb0] sm:$0xff]
          %v804 = vld [vmem:[%s3 + $0xb8] sm:$0xff]
          %v805 = vld [vmem:[%s3 + $0xc0] sm:$0xff]
          %v806 = vld [vmem:[%s3 + $0xc8] sm:$0xff]
          %v807 = vld [vmem:[%s3 + $0xd0] sm:$0xff]
          %v808 = vld [vmem:[%s3 + $0xd8] sm:$0xff]
          %v809 = vld [vmem:[%s3 + $0xe0] sm:$0xff]
          %v810 = vld [vmem:[%s3 + $0xe8] sm:$0xff]
          %v811 = vld [vmem:[%s3 + $0xf0] sm:$0xff]
          %v812 = vld [vmem:[%s3 + $0xf8] sm:$0xff]
          %v813 = vld [vmem:[%s4] sm:$0xf]
          %v815 = vlaneseq
          %v816 = vshrl.u32 %v815, 7
          %v817 = vsub.s32 0, %v816
          %v818 = vrot.slane %v813, %v817
          %v819 = vlaneseq
          %v820 = vshrl.u32 %v819, 7
          %v821 = vsub.s32 1, %v820
          %v822 = vrot.slane %v813, %v821
          %v823 = vlaneseq
          %v824 = vshrl.u32 %v823, 7
          %v825 = vsub.s32 2, %v824
          %v826 = vrot.slane %v813, %v825
          %v827 = vlaneseq
          %v828 = vshrl.u32 %v827, 7
          %v829 = vsub.s32 3, %v828
          %v830 = vrot.slane %v813, %v829
          %v867 = vunpack.c.l.b16 %v781
          %v868 = vunpack.c.h.b16 %v781
          %v869 = vunpack.c.l.b16 %v782
          %v870 = vunpack.c.h.b16 %v782
          %v871 = vunpack.c.l.b16 %v783
          %v872 = vunpack.c.h.b16 %v783
          %v873 = vunpack.c.l.b16 %v784
          %v874 = vunpack.c.h.b16 %v784
          %v875 = vunpack.c.l.b16 %v785
          %v876 = vunpack.c.h.b16 %v785
          %v877 = vunpack.c.l.b16 %v786
          %v878 = vunpack.c.h.b16 %v786
          %v879 = vunpack.c.l.b16 %v787
          %v880 = vunpack.c.h.b16 %v787
          %v881 = vunpack.c.l.b16 %v788
          %v882 = vunpack.c.h.b16 %v788
          %v883 = vunpack.c.l.b16 %v789
          %v884 = vunpack.c.h.b16 %v789
          %v885 = vunpack.c.l.b16 %v790
          %v886 = vunpack.c.h.b16 %v790
          %v887 = vunpack.c.l.b16 %v791
          %v888 = vunpack.c.h.b16 %v791
          %v889 = vunpack.c.l.b16 %v792
          %v890 = vunpack.c.h.b16 %v792
          %v891 = vunpack.c.l.b16 %v793
          %v892 = vunpack.c.h.b16 %v793
          %v893 = vunpack.c.l.b16 %v794
          %v894 = vunpack.c.h.b16 %v794
          %v895 = vunpack.c.l.b16 %v795
          %v896 = vunpack.c.h.b16 %v795
          %v897 = vunpack.c.l.b16 %v796
          %v898 = vunpack.c.h.b16 %v796
          %v899 = vunpack.c.l.b16 %v797
          %v900 = vunpack.c.h.b16 %v797
          %v901 = vunpack.c.l.b16 %v798
          %v902 = vunpack.c.h.b16 %v798
          %v903 = vunpack.c.l.b16 %v799
          %v904 = vunpack.c.h.b16 %v799
          %v905 = vunpack.c.l.b16 %v800
          %v906 = vunpack.c.h.b16 %v800
          %v907 = vunpack.c.l.b16 %v801
          %v908 = vunpack.c.h.b16 %v801
          %v909 = vunpack.c.l.b16 %v802
          %v910 = vunpack.c.h.b16 %v802
          %v911 = vunpack.c.l.b16 %v803
          %v912 = vunpack.c.h.b16 %v803
          %v913 = vunpack.c.l.b16 %v804
          %v914 = vunpack.c.h.b16 %v804
          %v915 = vunpack.c.l.b16 %v805
          %v916 = vunpack.c.h.b16 %v805
          %v917 = vunpack.c.l.b16 %v806
          %v918 = vunpack.c.h.b16 %v806
          %v919 = vunpack.c.l.b16 %v807
          %v920 = vunpack.c.h.b16 %v807
          %v921 = vunpack.c.l.b16 %v808
          %v922 = vunpack.c.h.b16 %v808
          %v923 = vunpack.c.l.b16 %v809
          %v924 = vunpack.c.h.b16 %v809
          %v925 = vunpack.c.l.b16 %v810
          %v926 = vunpack.c.h.b16 %v810
          %v927 = vunpack.c.l.b16 %v811
          %v928 = vunpack.c.h.b16 %v811
          %v929 = vunpack.c.l.b16 %v812
          %v930 = vunpack.c.h.b16 %v812
          %v931 = vpack.c.b16 %v871, %v867
          %v932 = vpack.c.b16 %v872, %v868
          %v933 = vpack.c.b16 %v873, %v869
          %v934 = vpack.c.b16 %v874, %v870
          %v935 = vpack.c.b16 %v879, %v875
          %v936 = vpack.c.b16 %v880, %v876
          %v937 = vpack.c.b16 %v881, %v877
          %v938 = vpack.c.b16 %v882, %v878
          %v939 = vpack.c.b16 %v887, %v883
          %v940 = vpack.c.b16 %v888, %v884
          %v941 = vpack.c.b16 %v889, %v885
          %v942 = vpack.c.b16 %v890, %v886
          %v943 = vpack.c.b16 %v895, %v891
          %v944 = vpack.c.b16 %v896, %v892
          %v945 = vpack.c.b16 %v897, %v893
          %v946 = vpack.c.b16 %v898, %v894
          %v947 = vpack.c.b16 %v903, %v899
          %v948 = vpack.c.b16 %v904, %v900
          %v949 = vpack.c.b16 %v905, %v901
          %v950 = vpack.c.b16 %v906, %v902
          %v951 = vpack.c.b16 %v911, %v907
          %v952 = vpack.c.b16 %v912, %v908
          %v953 = vpack.c.b16 %v913, %v909
          %v954 = vpack.c.b16 %v914, %v910
          %v955 = vpack.c.b16 %v919, %v915
          %v956 = vpack.c.b16 %v920, %v916
          %v957 = vpack.c.b16 %v921, %v917
          %v958 = vpack.c.b16 %v922, %v918
          %v959 = vpack.c.b16 %v927, %v923
          %v960 = vpack.c.b16 %v928, %v924
          %v961 = vpack.c.b16 %v929, %v925
          %v962 = vpack.c.b16 %v930, %v926
          %995 = vmatprep.subr.bf16.mxu0 %v932
          %996 = vmatpush1.bf16.msra.mxu0 %v931
          %997 = vmatprep.subr.bf16.mxu0 %v936
          %998 = vmatpush1.bf16.msra.mxu0 %v935
          %999 = vmatprep.subr.bf16.mxu0 %v940
          %1000 = vmatpush1.bf16.msra.mxu0 %v939
          %1001 = vmatprep.subr.bf16.mxu0 %v944
          %1002 = vmatpush1.bf16.msra.mxu0 %v943
          %1003 = vmatprep.subr.bf16.mxu0 %v948
          %1004 = vmatpush1.bf16.msra.mxu0 %v947
          %1005 = vmatprep.subr.bf16.mxu0 %v952
          %1006 = vmatpush1.bf16.msra.mxu0 %v951
          %1007 = vmatprep.subr.bf16.mxu0 %v956
          %1008 = vmatpush1.bf16.msra.mxu0 %v955
          %1009 = vmatprep.subr.bf16.mxu0 %v960
          %1010 = vmatpush1.bf16.msra.mxu0 %v959
          %1011 = vmatprep.subr.bf16.mxu0 0
          %1012 = vmatpush1.bf16.msra.mxu0 0
          %1013 = vmatprep.subr.bf16.mxu0 0
          %1014 = vmatpush1.bf16.msra.mxu0 0
          %1015 = vmatprep.subr.bf16.mxu0 0
          %1016 = vmatpush1.bf16.msra.mxu0 0
          %1017 = vmatprep.subr.bf16.mxu0 0
          %1018 = vmatpush1.bf16.msra.mxu0 0
          %1019 = vmatprep.subr.bf16.mxu0 0
          %1020 = vmatpush1.bf16.msra.mxu0 0
          %1021 = vmatprep.subr.bf16.mxu0 0
          %1022 = vmatpush1.bf16.msra.mxu0 0
          %1023 = vmatprep.subr.bf16.mxu0 0
          %1024 = vmatpush1.bf16.msra.mxu0 0
          %1025 = vmatprep.subr.bf16.mxu0 0
          %1026 = vmatpush1.bf16.msra.mxu0 0
          %1027 = vmatprep.mubr.bf16.mxu0 0
          %1028 = vmatmul.mubr.bf16.gmra.mrb[0].mxu0 %v780
          %v1029 = vpop.f32.mrb[0].mxu0
          %v1030 = vadd.f32 %v818, %v1029
          %v1031 = vpop.f32.mrb[0].mxu0
          %v1032 = vadd.f32 %v822, %v1031
          %v1033 = vpop.f32.mrb[0].mxu0
          %v1034 = vadd.f32 %v818, %v1033
          %v1035 = vpop.f32.mrb[0].mxu0
          %v1036 = vadd.f32 %v822, %v1035
          %1037 = vdwg.mxu0
          %1038 = vmatprep.subr.bf16.mxu0 %v934
          %1039 = vmatpush1.bf16.msra.mxu0 %v933
          %1040 = vmatprep.subr.bf16.mxu0 %v938
          %1041 = vmatpush1.bf16.msra.mxu0 %v937
          %1042 = vmatprep.subr.bf16.mxu0 %v942
          %1043 = vmatpush1.bf16.msra.mxu0 %v941
          %1044 = vmatprep.subr.bf16.mxu0 %v946
          %1045 = vmatpush1.bf16.msra.mxu0 %v945
          %1046 = vmatprep.subr.bf16.mxu0 %v950
          %1047 = vmatpush1.bf16.msra.mxu0 %v949
          %1048 = vmatprep.subr.bf16.mxu0 %v954
          %1049 = vmatpush1.bf16.msra.mxu0 %v953
          %1050 = vmatprep.subr.bf16.mxu0 %v958
          %1051 = vmatpush1.bf16.msra.mxu0 %v957
          %1052 = vmatprep.subr.bf16.mxu0 %v962
          %1053 = vmatpush1.bf16.msra.mxu0 %v961
          %1054 = vmatprep.subr.bf16.mxu0 0
          %1055 = vmatpush1.bf16.msra.mxu0 0
          %1056 = vmatprep.subr.bf16.mxu0 0
          %1057 = vmatpush1.bf16.msra.mxu0 0
          %1058 = vmatprep.subr.bf16.mxu0 0
          %1059 = vmatpush1.bf16.msra.mxu0 0
          %1060 = vmatprep.subr.bf16.mxu0 0
          %1061 = vmatpush1.bf16.msra.mxu0 0
          %1062 = vmatprep.subr.bf16.mxu0 0
          %1063 = vmatpush1.bf16.msra.mxu0 0
          %1064 = vmatprep.subr.bf16.mxu0 0
          %1065 = vmatpush1.bf16.msra.mxu0 0
          %1066 = vmatprep.subr.bf16.mxu0 0
          %1067 = vmatpush1.bf16.msra.mxu0 0
          %1068 = vmatprep.subr.bf16.mxu0 0
          %1069 = vmatpush1.bf16.msra.mxu0 0
          %1070 = vmatprep.mubr.bf16.mxu0 0
          %1071 = vmatmul.mubr.bf16.gmra.mrb[0].mxu0 %v780
          %v1072 = vpop.f32.mrb[0].mxu0
          %v1073 = vadd.f32 %v826, %v1072
          %v1074 = vpop.f32.mrb[0].mxu0
          %v1075 = vadd.f32 %v830, %v1074
          %v1076 = vpop.f32.mrb[0].mxu0
          %v1077 = vadd.f32 %v826, %v1076
          %v1078 = vpop.f32.mrb[0].mxu0
          %v1079 = vadd.f32 %v830, %v1078
          %1080 = vdwg.mxu0
          %v1081 = vmax.f32 %v1030, 0.0
          %v1082 = vmax.f32 %v1032, 0.0
          %v1083 = vmax.f32 %v1073, 0.0
          %v1084 = vmax.f32 %v1075, 0.0
          %v1085 = vmax.f32 %v1034, 0.0
          %v1086 = vmax.f32 %v1036, 0.0
          %v1087 = vmax.f32 %v1077, 0.0
          %v1088 = vmax.f32 %v1079, 0.0
          %v1089 = vpack.c.bf16 %v1085, %v1081
          %v1090 = vpack.c.bf16 %v1086, %v1082
          %v1091 = vpack.c.bf16 %v1087, %v1083
          %v1092 = vpack.c.bf16 %v1088, %v1084
          %v1093 = vld [vmem:[%s5] sm:$0xf]
          %v1094 = vld [vmem:[%s5 + $0x4] sm:$0xf]
          %v1095 = vld [vmem:[%s5 + $0x8] sm:$0xf]
          %v1096 = vld [vmem:[%s5 + $0xc] sm:$0xf]
          %v1097 = vld [vmem:[%s5 + $0x10] sm:$0xf]
          %v1098 = vld [vmem:[%s5 + $0x14] sm:$0xf]
          %v1099 = vld [vmem:[%s5 + $0x18] sm:$0xf]
          %v1100 = vld [vmem:[%s5 + $0x1c] sm:$0xf]
          %v1101 = vld [vmem:[%s5 + $0x20] sm:$0xf]
          %v1102 = vld [vmem:[%s5 + $0x24] sm:$0xf]
          %v1103 = vld [vmem:[%s5 + $0x28] sm:$0xf]
          %v1104 = vld [vmem:[%s5 + $0x2c] sm:$0xf]
          %v1105 = vld [vmem:[%s5 + $0x30] sm:$0xf]
          %v1106 = vld [vmem:[%s5 + $0x34] sm:$0xf]
          %v1107 = vld [vmem:[%s5 + $0x38] sm:$0xf]
          %v1108 = vld [vmem:[%s5 + $0x3c] sm:$0xf]
          %v1109 = vld [vmem:[%s5 + $0x40] sm:$0xf]
          %v1110 = vld [vmem:[%s5 + $0x44] sm:$0xf]
          %v1111 = vld [vmem:[%s5 + $0x48] sm:$0xf]
          %v1112 = vld [vmem:[%s5 + $0x4c] sm:$0xf]
          %v1113 = vld [vmem:[%s5 + $0x50] sm:$0xf]
          %v1114 = vld [vmem:[%s5 + $0x54] sm:$0xf]
          %v1115 = vld [vmem:[%s5 + $0x58] sm:$0xf]
          %v1116 = vld [vmem:[%s5 + $0x5c] sm:$0xf]
          %v1117 = vld [vmem:[%s5 + $0x60] sm:$0xf]
          %v1118 = vld [vmem:[%s5 + $0x64] sm:$0xf]
          %v1119 = vld [vmem:[%s5 + $0x68] sm:$0xf]
          %v1120 = vld [vmem:[%s5 + $0x6c] sm:$0xf]
          %v1121 = vld [vmem:[%s5 + $0x70] sm:$0xf]
          %v1122 = vld [vmem:[%s5 + $0x74] sm:$0xf]
          %v1123 = vld [vmem:[%s5 + $0x78] sm:$0xf]
          %v1124 = vld [vmem:[%s5 + $0x7c] sm:$0xf]
          %v1125 = vld [vmem:[%s5 + $0x80] sm:$0xf]
          %v1126 = vld [vmem:[%s5 + $0x84] sm:$0xf]
          %v1127 = vld [vmem:[%s5 + $0x88] sm:$0xf]
          %v1128 = vld [vmem:[%s5 + $0x8c] sm:$0xf]
          %v1129 = vld [vmem:[%s5 + $0x90] sm:$0xf]
          %v1130 = vld [vmem:[%s5 + $0x94] sm:$0xf]
          %v1131 = vld [vmem:[%s5 + $0x98] sm:$0xf]
          %v1132 = vld [vmem:[%s5 + $0x9c] sm:$0xf]
          %v1133 = vld [vmem:[%s5 + $0xa0] sm:$0xf]
          %v1134 = vld [vmem:[%s5 + $0xa4] sm:$0xf]
          %v1135 = vld [vmem:[%s5 + $0xa8] sm:$0xf]
          %v1136 = vld [vmem:[%s5 + $0xac] sm:$0xf]
          %v1137 = vld [vmem:[%s5 + $0xb0] sm:$0xf]
          %v1138 = vld [vmem:[%s5 + $0xb4] sm:$0xf]
          %v1139 = vld [vmem:[%s5 + $0xb8] sm:$0xf]
          %v1140 = vld [vmem:[%s5 + $0xbc] sm:$0xf]
          %v1141 = vld [vmem:[%s5 + $0xc0] sm:$0xf]
          %v1142 = vld [vmem:[%s5 + $0xc4] sm:$0xf]
          %v1143 = vld [vmem:[%s5 + $0xc8] sm:$0xf]
          %v1144 = vld [vmem:[%s5 + $0xcc] sm:$0xf]
          %v1145 = vld [vmem:[%s5 + $0xd0] sm:$0xf]
          %v1146 = vld [vmem:[%s5 + $0xd4] sm:$0xf]
          %v1147 = vld [vmem:[%s5 + $0xd8] sm:$0xf]
          %v1148 = vld [vmem:[%s5 + $0xdc] sm:$0xf]
          %v1149 = vld [vmem:[%s5 + $0xe0] sm:$0xf]
          %v1150 = vld [vmem:[%s5 + $0xe4] sm:$0xf]
          %v1151 = vld [vmem:[%s5 + $0xe8] sm:$0xf]
          %v1152 = vld [vmem:[%s5 + $0xec] sm:$0xf]
          %v1153 = vld [vmem:[%s5 + $0xf0] sm:$0xf]
          %v1154 = vld [vmem:[%s5 + $0xf4] sm:$0xf]
          %v1155 = vld [vmem:[%s5 + $0xf8] sm:$0xf]
          %v1156 = vld [vmem:[%s5 + $0xfc] sm:$0xf]
          %v1157 = vld [vmem:[%s6] sm:$0x1]
          %v1159 = vlaneseq
          %v1160 = vshrl.u32 %v1159, 7
          %v1161 = vsub.s32 0, %v1160
          %v1162 = vrot.slane %v1157, %v1161
          %v1228 = vunpack.c.l.b16 %v1093
          %v1229 = vunpack.c.l.b16 %v1094
          %v1230 = vunpack.c.l.b16 %v1095
          %v1231 = vunpack.c.l.b16 %v1096
          %v1232 = vunpack.c.l.b16 %v1097
          %v1233 = vunpack.c.l.b16 %v1098
          %v1234 = vunpack.c.l.b16 %v1099
          %v1235 = vunpack.c.l.b16 %v1100
          %v1236 = vunpack.c.l.b16 %v1101
          %v1237 = vunpack.c.l.b16 %v1102
          %v1238 = vunpack.c.l.b16 %v1103
          %v1239 = vunpack.c.l.b16 %v1104
          %v1240 = vunpack.c.l.b16 %v1105
          %v1241 = vunpack.c.l.b16 %v1106
          %v1242 = vunpack.c.l.b16 %v1107
          %v1243 = vunpack.c.l.b16 %v1108
          %v1244 = vunpack.c.l.b16 %v1109
          %v1245 = vunpack.c.l.b16 %v1110
          %v1246 = vunpack.c.l.b16 %v1111
          %v1247 = vunpack.c.l.b16 %v1112
          %v1248 = vunpack.c.l.b16 %v1113
          %v1249 = vunpack.c.l.b16 %v1114
          %v1250 = vunpack.c.l.b16 %v1115
          %v1251 = vunpack.c.l.b16 %v1116
          %v1252 = vunpack.c.l.b16 %v1117
          %v1253 = vunpack.c.l.b16 %v1118
          %v1254 = vunpack.c.l.b16 %v1119
          %v1255 = vunpack.c.l.b16 %v1120
          %v1256 = vunpack.c.l.b16 %v1121
          %v1257 = vunpack.c.l.b16 %v1122
          %v1258 = vunpack.c.l.b16 %v1123
          %v1259 = vunpack.c.l.b16 %v1124
          %v1260 = vunpack.c.l.b16 %v1125
          %v1261 = vunpack.c.l.b16 %v1126
          %v1262 = vunpack.c.l.b16 %v1127
          %v1263 = vunpack.c.l.b16 %v1128
          %v1264 = vunpack.c.l.b16 %v1129
          %v1265 = vunpack.c.l.b16 %v1130
          %v1266 = vunpack.c.l.b16 %v1131
          %v1267 = vunpack.c.l.b16 %v1132
          %v1268 = vunpack.c.l.b16 %v1133
          %v1269 = vunpack.c.l.b16 %v1134
          %v1270 = vunpack.c.l.b16 %v1135
          %v1271 = vunpack.c.l.b16 %v1136
          %v1272 = vunpack.c.l.b16 %v1137
          %v1273 = vunpack.c.l.b16 %v1138
          %v1274 = vunpack.c.l.b16 %v1139
          %v1275 = vunpack.c.l.b16 %v1140
          %v1276 = vunpack.c.l.b16 %v1141
          %v1277 = vunpack.c.l.b16 %v1142
          %v1278 = vunpack.c.l.b16 %v1143
          %v1279 = vunpack.c.l.b16 %v1144
          %v1280 = vunpack.c.l.b16 %v1145
          %v1281 = vunpack.c.l.b16 %v1146
          %v1282 = vunpack.c.l.b16 %v1147
          %v1283 = vunpack.c.l.b16 %v1148
          %v1284 = vunpack.c.l.b16 %v1149
          %v1285 = vunpack.c.l.b16 %v1150
          %v1286 = vunpack.c.l.b16 %v1151
          %v1287 = vunpack.c.l.b16 %v1152
          %v1288 = vunpack.c.l.b16 %v1153
          %v1289 = vunpack.c.l.b16 %v1154
          %v1290 = vunpack.c.l.b16 %v1155
          %v1291 = vunpack.c.l.b16 %v1156
          %v1292 = vpack.c.b16 %v1229, %v1228
          %v1293 = vpack.c.b16 %v1231, %v1230
          %v1294 = vpack.c.b16 %v1233, %v1232
          %v1295 = vpack.c.b16 %v1235, %v1234
          %v1296 = vpack.c.b16 %v1237, %v1236
          %v1297 = vpack.c.b16 %v1239, %v1238
          %v1298 = vpack.c.b16 %v1241, %v1240
          %v1299 = vpack.c.b16 %v1243, %v1242
          %v1300 = vpack.c.b16 %v1245, %v1244
          %v1301 = vpack.c.b16 %v1247, %v1246
          %v1302 = vpack.c.b16 %v1249, %v1248
          %v1303 = vpack.c.b16 %v1251, %v1250
          %v1304 = vpack.c.b16 %v1253, %v1252
          %v1305 = vpack.c.b16 %v1255, %v1254
          %v1306 = vpack.c.b16 %v1257, %v1256
          %v1307 = vpack.c.b16 %v1259, %v1258
          %v1308 = vpack.c.b16 %v1261, %v1260
          %v1309 = vpack.c.b16 %v1263, %v1262
          %v1310 = vpack.c.b16 %v1265, %v1264
          %v1311 = vpack.c.b16 %v1267, %v1266
          %v1312 = vpack.c.b16 %v1269, %v1268
          %v1313 = vpack.c.b16 %v1271, %v1270
          %v1314 = vpack.c.b16 %v1273, %v1272
          %v1315 = vpack.c.b16 %v1275, %v1274
          %v1316 = vpack.c.b16 %v1277, %v1276
          %v1317 = vpack.c.b16 %v1279, %v1278
          %v1318 = vpack.c.b16 %v1281, %v1280
          %v1319 = vpack.c.b16 %v1283, %v1282
          %v1320 = vpack.c.b16 %v1285, %v1284
          %v1321 = vpack.c.b16 %v1287, %v1286
          %v1322 = vpack.c.b16 %v1289, %v1288
          %v1323 = vpack.c.b16 %v1291, %v1290
          %1356 = vmatprep.subr.bf16.mxu0 0
          %1357 = vmatpush1.bf16.msra.mxu0 %v1292
          %1358 = vmatprep.subr.bf16.mxu0 0
          %1359 = vmatpush1.bf16.msra.mxu0 %v1293
          %1360 = vmatprep.subr.bf16.mxu0 0
          %1361 = vmatpush1.bf16.msra.mxu0 %v1294
          %1362 = vmatprep.subr.bf16.mxu0 0
          %1363 = vmatpush1.bf16.msra.mxu0 %v1295
          %1364 = vmatprep.subr.bf16.mxu0 0
          %1365 = vmatpush1.bf16.msra.mxu0 %v1296
          %1366 = vmatprep.subr.bf16.mxu0 0
          %1367 = vmatpush1.bf16.msra.mxu0 %v1297
          %1368 = vmatprep.subr.bf16.mxu0 0
          %1369 = vmatpush1.bf16.msra.mxu0 %v1298
          %1370 = vmatprep.subr.bf16.mxu0 0
          %1371 = vmatpush1.bf16.msra.mxu0 %v1299
          %1372 = vmatprep.subr.bf16.mxu0 0
          %1373 = vmatpush1.bf16.msra.mxu0 %v1300
          %1374 = vmatprep.subr.bf16.mxu0 0
          %1375 = vmatpush1.bf16.msra.mxu0 %v1301
          %1376 = vmatprep.subr.bf16.mxu0 0
          %1377 = vmatpush1.bf16.msra.mxu0 %v1302
          %1378 = vmatprep.subr.bf16.mxu0 0
          %1379 = vmatpush1.bf16.msra.mxu0 %v1303
          %1380 = vmatprep.subr.bf16.mxu0 0
          %1381 = vmatpush1.bf16.msra.mxu0 %v1304
          %1382 = vmatprep.subr.bf16.mxu0 0
          %1383 = vmatpush1.bf16.msra.mxu0 %v1305
          %1384 = vmatprep.subr.bf16.mxu0 0
          %1385 = vmatpush1.bf16.msra.mxu0 %v1306
          %1386 = vmatprep.subr.bf16.mxu0 0
          %1387 = vmatpush1.bf16.msra.mxu0 %v1307
          %1388 = vmatprep.mubr.bf16.mxu0 %v1090
          %1389 = vmatmul.mubr.bf16.gmra.mrb[0].mxu0 %v1089
          %v1390 = vpop.f32.mrb[0].mxu0
          %v1391 = vadd.f32 %v1162, %v1390
          %v1392 = vpop.f32.mrb[0].mxu0
          %v1393 = vpop.f32.mrb[0].mxu0
          %v1394 = vadd.f32 %v1162, %v1393
          %v1395 = vpop.f32.mrb[0].mxu0
          %1396 = vdwg.mxu0
          %1397 = vmatprep.subr.bf16.mxu0 0
          %1398 = vmatpush1.bf16.msra.mxu0 %v1308
          %1399 = vmatprep.subr.bf16.mxu0 0
          %1400 = vmatpush1.bf16.msra.mxu0 %v1309
          %1401 = vmatprep.subr.bf16.mxu0 0
          %1402 = vmatpush1.bf16.msra.mxu0 %v1310
          %1403 = vmatprep.subr.bf16.mxu0 0
          %1404 = vmatpush1.bf16.msra.mxu0 %v1311
          %1405 = vmatprep.subr.bf16.mxu0 0
          %1406 = vmatpush1.bf16.msra.mxu0 %v1312
          %1407 = vmatprep.subr.bf16.mxu0 0
          %1408 = vmatpush1.bf16.msra.mxu0 %v1313
          %1409 = vmatprep.subr.bf16.mxu0 0
          %1410 = vmatpush1.bf16.msra.mxu0 %v1314
          %1411 = vmatprep.subr.bf16.mxu0 0
          %1412 = vmatpush1.bf16.msra.mxu0 %v1315
          %1413 = vmatprep.subr.bf16.mxu0 0
          %1414 = vmatpush1.bf16.msra.mxu0 %v1316
          %1415 = vmatprep.subr.bf16.mxu0 0
          %1416 = vmatpush1.bf16.msra.mxu0 %v1317
          %1417 = vmatprep.subr.bf16.mxu0 0
          %1418 = vmatpush1.bf16.msra.mxu0 %v1318
          %1419 = vmatprep.subr.bf16.mxu0 0
          %1420 = vmatpush1.bf16.msra.mxu0 %v1319
          %1421 = vmatprep.subr.bf16.mxu0 0
          %1422 = vmatpush1.bf16.msra.mxu0 %v1320
          %1423 = vmatprep.subr.bf16.mxu0 0
          %1424 = vmatpush1.bf16.msra.mxu0 %v1321
          %1425 = vmatprep.subr.bf16.mxu0 0
          %1426 = vmatpush1.bf16.msra.mxu0 %v1322
          %1427 = vmatprep.subr.bf16.mxu0 0
          %1428 = vmatpush1.bf16.msra.mxu0 %v1323
          %1429 = vmatprep.mubr.bf16.mxu0 %v1092
          %1430 = vmatmul.mubr.bf16.gmra.mrb[0].mxu0 %v1091
          %v1431 = vpop.f32.mrb[0].mxu0
          %v1432 = vadd.f32 %v1391, %v1431
          %v1433 = vpop.f32.mrb[0].mxu0
          %v1434 = vpop.f32.mrb[0].mxu0
          %v1435 = vadd.f32 %v1394, %v1434
          %v1436 = vpop.f32.mrb[0].mxu0
          %1437 = vdwg.mxu0
          %1438 = vst [vmem:[%s386] sm:$0xff] %v1432
          %1439 = vst [vmem:[%s386 + $0x8] sm:$0xff] %v1435
        $region79: #{simclr_forward.1} parent=66 // pred_fallthru
          _
        %s1440 = smul.u32 2, %s24
        %p1441 = scmp.lt.s32.totalorder %s1440, 1
        %s1442 = scalar_select %p1441, %s1440, 1
        %s1443 = smul.addr %s1442, 8
        %s1444 = scalar_lea.vmem %s7, %s1443
        %s1445 = smul.u32 2, %s24
        %p1446 = scmp.lt.s32.totalorder %s1445, 1
        %s1447 = scalar_select %p1446, %s1445, 1
        %s1448 = smul.addr %s1447, 8
        %s1449 = scalar_lea.vmem %s8, %s1448
        // Predicated region
        $region80: #{simclr_forward.1} parent=66 // pred_check
          %p1450 = pneg %p209
        $region81: #{simclr_forward.1} parent=66 // pred_check_branch
          %1452 = sbr.rel (%p1450) target = $region83
        $region82: #{simclr_forward.1} parent=66 // pred_region
          %s1453 = smul.u32 2, %s24
        $region83: #{simclr_forward.1} parent=66 // pred_fallthru
          _
        // Predicated region
        $region84: #{simclr_forward.1} parent=66 // pred_check
          %p1454 = pneg %p235
        $region85: #{simclr_forward.1} parent=66 // pred_check_branch
          %1456 = sbr.rel (%p1454) target = $region87
        $region86: #{simclr_forward.1} parent=66 // pred_region
          %s1457 = smul.u32 2, %s24
        $region87: #{simclr_forward.1} parent=66 // pred_fallthru
          _
        // Predicated region
        $region88: #{simclr_forward.1} parent=66 // pred_check
          %p1458 = pneg %p209
        $region89: #{simclr_forward.1} parent=66 // pred_check_branch
          %1460 = sbr.rel (%p1458) target = $region91
        $region90: #{simclr_forward.1} parent=66 // pred_region
          %s1461 = smul.u32 2, %s24
          %p1462 = scmp.lt.s32.totalorder %s1461, 1
          %s1463 = scalar_select %p1462, %s1461, 1
          %s1464 = smul.addr %s1463, 8
          %s1465 = scalar_lea.vmem %s7, %s1464
        $region91: #{simclr_forward.1} parent=66 // pred_fallthru
          _
        // Predicated region
        $region92: #{simclr_forward.1} parent=66 // pred_check
          %p1466 = pneg %p235
        $region93: #{simclr_forward.1} parent=66 // pred_check_branch
          %1468 = sbr.rel (%p1466) target = $region95
        $region94: #{simclr_forward.1} parent=66 // pred_region
          %s1469 = smul.u32 2, %s24
          %p1470 = scmp.lt.s32.totalorder %s1469, 1
          %s1471 = scalar_select %p1470, %s1469, 1
          %s1472 = smul.addr %s1471, 8
          %s1473 = scalar_lea.vmem %s8, %s1472
        $region95: #{simclr_forward.1} parent=66 // pred_fallthru
          _
      $region67: #{simclr_forward.1} parent=5 // pred_fallthru
        _
      %p1474 = scmp.le.s32.totalorder 2, %s15
      // Predicated region
      $region96: #{simclr_forward.1} parent=5 // pred_check
        %p1475 = pneg %p1474
      $region97: #{simclr_forward.1} parent=5 // pred_check_branch
        %1477 = sbr.rel (%p1475) target = $region99
      $region98: #{simclr_forward.1} parent=5 // pred_region
        %s1478 = ssub.s32 %s15, 2
      $region99: #{simclr_forward.1} parent=5 // pred_fallthru
        _
    $region6: #{simclr_forward.1} parent=1 // loop_footer
      %s19 = sadd.s32 1, %s15
    $region7: #{simclr_forward.1} parent=1 // loop_footer_branch
      %14 = sbr.rel target = $region3
    $region8: #{simclr_forward.1} parent=1 // loop_exit
      _

</llo_original>
